<compile_context>
chip_gen: v7x
topology: tpu7x:2x2x1
jax: 0.10.0
libtpu: 0.0.40
codegen_flags: <defaults>
</compile_context>

<pallas_src>
import functools

import jax
import jax.numpy as jnp
from jax.experimental import pallas as pl
from jax.experimental.pallas import tpu as pltpu


def _focal_kernel(*refs, gamma, has_alpha, needs_mask, hw):
    if has_alpha:
        alpha_ref, x_ref, y_ref, out_ref = refs
    else:
        x_ref, y_ref, out_ref = refs

    x = x_ref[...].astype(jnp.float32)            # (1, C, T) classes on sublanes
    y = y_ref[...].astype(jnp.int32)              # (1, 1, T) lane-dense labels

    class_ids = jax.lax.broadcasted_iota(jnp.int32, x.shape, 1)
    is_true = class_ids == y                      # (1, C, T) bool, no float one-hot

    # numerically stable log-sum-exp over classes
    m = jnp.max(x, axis=1, keepdims=True)         # (1, 1, T)
    e = jnp.exp(x - m)                            # (1, C, T)
    s = jnp.sum(e, axis=1, keepdims=True)         # (1, 1, T)

    # logit of the true class via select+max (no int->float convert / multiply)
    x_at_y = jnp.max(jnp.where(is_true, x, -jnp.inf), axis=1, keepdims=True)
    logpt = (m - x_at_y) + jnp.log(s)             # = lse - x[y]  >= 0

    if has_alpha:
        a = alpha_ref[...].astype(jnp.float32)    # (1, C, 1) class weights
        a_at_y = jnp.sum(jnp.where(is_true, a, 0.0), axis=1, keepdims=True)
        logpt = a_at_y * logpt                    # CE(weight=alpha), per spec
        pt = jnp.exp(-logpt)
    else:
        # reuse the per-class exponentials: pt = softmax(x)[y] with no 2nd exp
        e_at_y = jnp.max(jnp.where(is_true, e, 0.0), axis=1, keepdims=True)
        pt = e_at_y / s

    one_minus_pt = jnp.maximum(1.0 - pt, 0.0)     # guard fractional-gamma NaN
    g = float(gamma)
    focal_w = one_minus_pt ** (int(g) if g == int(g) else g)
    focal = focal_w * logpt                       # (1, 1, T)

    if needs_mask:                                # only when tile does not divide HW
        t = focal.shape[-1]
        lane = jax.lax.broadcasted_iota(jnp.int32, focal.shape, 2)
        pix = pl.program_id(1) * t + lane
        focal = jnp.where(pix < hw, focal, 0.0)   # OOB-tail pixels contribute 0

    # one partial sum per tile; independent output block -> no serialization
    out_ref[...] = jnp.broadcast_to(jnp.sum(focal), out_ref.shape)


def _vmem_capacity_bytes():
    try:
        info = pltpu.get_tpu_info()
        cap = getattr(info, "vmem_capacity_bytes", None)
        if cap:
            return int(cap)
    except Exception:
        pass
    return 64 * 2**20     # conservative (v7x-sized) default if the query fails


def _pick_tile(hw, cap):
    """Largest 128-multiple tile <= cap; prefer one that divides hw exactly."""
    lo = max(128, cap // 2)
    t = cap
    while t >= lo:
        if hw % t == 0:
            return t, False
        t -= 128
    return cap, True      # no good divisor: masked tail tile


def focal_loss(logits_nchw, labels_nhw, *, gamma=2, alpha=None,
               size_average: bool = True):
    """FocalLoss forward. logits: (N, C, H, W) float, labels: (N, H, W) int."""
    n, c, h, w = logits_nchw.shape
    hw = h * w
    p_total = n * hw
    itemsize = jnp.dtype(logits_nchw.dtype).itemsize

    # narrow labels to cut HBM bytes (widened in-kernel)
    lbl_dtype = jnp.int8 if c <= 127 else jnp.int32
    lbl_itemsize = jnp.dtype(lbl_dtype).itemsize
    bytes_per_px = c * itemsize + lbl_itemsize

    # ---- generation-aware tile sizing ----
    vmem_cap = _vmem_capacity_bytes()
    block_budget = 6 * 2**20 if vmem_cap <= 64 * 2**20 else 8 * 2**20
    tile_budget = max(128, (block_budget // bytes_per_px) // 128 * 128)

    # keep >= ~8 total grid steps so both v7x TCs run and pipelining overlaps
    min_chunks = max(1, -(-8 // n))
    tile_split = max(128, (hw // min_chunks) // 128 * 128)

    if hw <= 128:
        tile, needs_mask = hw, False              # block == full dim (legal)
    else:
        cap = max(128, min(tile_budget, tile_split))
        tile, needs_mask = _pick_tile(hw, cap)
    num_chunks = -(-hw // tile)

    # ---- free reshapes only (no HBM transpose); keep input dtype (bf16 ok) ----
    x3 = logits_nchw.reshape(n, c, hw)
    y3 = labels_nhw.reshape(n, 1, hw).astype(lbl_dtype)

    has_alpha = alpha is not None
    kernel = functools.partial(_focal_kernel, gamma=float(gamma),
                               has_alpha=has_alpha, needs_mask=needs_mask, hw=hw)

    in_specs = []
    inputs = []
    if has_alpha:
        a3 = jnp.asarray(alpha, jnp.float32).reshape(1, c, 1)
        in_specs.append(pl.BlockSpec((1, c, 1), lambda i, j: (0, 0, 0)))
        inputs.append(a3)
    in_specs += [
        pl.BlockSpec((1, c, tile), lambda i, j: (i, 0, j)),   # logits block
        pl.BlockSpec((1, 1, tile), lambda i, j: (i, 0, j)),   # lane-dense labels
    ]
    inputs += [x3, y3]

    block_bytes = tile * bytes_per_px
    vmem_limit = int(min(int(vmem_cap * 0.75),                # headroom on v7x
                         max(32 * 2**20, 3 * block_bytes + (4 << 20))))

    cost = pl.CostEstimate(
        flops=p_total * (6 * c + 12),
        transcendentals=p_total * (c + 2),
        bytes_accessed=p_total * c * itemsize + p_total * lbl_itemsize
                       + n * num_chunks * 128 * 4 + c * 4,
    )

    partials = pl.pallas_call(
        kernel,
        out_shape=jax.ShapeDtypeStruct((n, num_chunks, 1, 128), jnp.float32),
        grid_spec=pltpu.PrefetchScalarGridSpec(
            num_scalar_prefetch=0,
            grid=(n, num_chunks),
            in_specs=in_specs,
            out_specs=pl.BlockSpec((1, 1, 1, 128), lambda i, j: (i, j, 0, 0)),
        ),
        compiler_params=pltpu.CompilerParams(
            dimension_semantics=("parallel", "parallel"),
            vmem_limit_bytes=vmem_limit),
        cost_estimate=cost,
    )(*inputs)

    total = jnp.sum(partials[:, :, 0, 0])          # tiny cross-tile combine in JAX
    if size_average:
        return total / float(p_total)
    return total


def _reference(logits_nchw, labels_nhw, gamma=2.0, alpha=None, size_average=True):
    n, c, h, w = logits_nchw.shape
    x = jnp.transpose(logits_nchw, (0, 2, 3, 1)).reshape(-1, c).astype(jnp.float32)
    y = labels_nhw.reshape(-1)
    logp = jax.nn.log_softmax(x, axis=-1)
    ce = -jnp.take_along_axis(logp, y[:, None], axis=-1)[:, 0]
    if alpha is not None:
        ce = ce * jnp.asarray(alpha, jnp.float32)[y]
    pt = jnp.exp(-ce)
    loss = (1.0 - pt) ** gamma * ce
    return jnp.mean(loss) if size_average else jnp.sum(loss)


if __name__ == "__main__":
    key = jax.random.PRNGKey(0)
    k1, k2, k3, k4 = jax.random.split(key, 4)

    # main case: N=2, C=4, 16x16 -> multi-chunk grid, no tail mask, no alpha
    N, C, H, W = 2, 4, 16, 16
    logits = jax.random.normal(k1, (N, C, H, W), dtype=jnp.float32)
    labels = jax.random.randint(k2, (N, H, W), 0, C, dtype=jnp.int32)

    loss = focal_loss(logits, labels, gamma=2, size_average=True)
    jax.block_until_ready(loss)
    ref = _reference(logits, labels, gamma=2.0, size_average=True)
    assert jnp.allclose(loss, ref, rtol=1e-5, atol=1e-5), (loss, ref)

    loss_sum = focal_loss(logits, labels, gamma=2, size_average=False)
    jax.block_until_ready(loss_sum)
    ref_sum = _reference(logits, labels, gamma=2.0, size_average=False)
    assert jnp.allclose(loss_sum, ref_sum, rtol=1e-5, atol=1e-4), (loss_sum, ref_sum)

    # masked-tail + alpha + fractional-gamma path: HW = 180 (not 128-divisible)
    N2, C2, H2, W2 = 1, 5, 12, 15
    logits2 = jax.random.normal(k3, (N2, C2, H2, W2), dtype=jnp.float32)
    labels2 = jax.random.randint(k4, (N2, H2, W2), 0, C2, dtype=jnp.int32)
    alpha2 = jnp.array([0.5, 1.0, 2.0, 1.5, 0.25], jnp.float32)
    loss2 = focal_loss(logits2, labels2, gamma=1.5, alpha=alpha2, size_average=True)
    jax.block_until_ready(loss2)
    ref2 = _reference(logits2, labels2, gamma=1.5, alpha=alpha2, size_average=True)
    assert jnp.allclose(loss2, ref2, rtol=1e-5, atol=1e-5), (loss2, ref2)

    print("KERNEL_OK")
</pallas_src>

<mosaic_0001>
module attributes {stable_mosaic.version = 11 : i64} {
  func.func @_focal_kernel(%arg0: i32, %arg1: i32, %arg2: memref<1x4x128xf32, #tpu.memory_space<vmem>>, %arg3: memref<1x1x128xi8, #tpu.memory_space<vmem>>, %arg4: memref<1x1x1x128xf32, #tpu.memory_space<vmem>>) attributes {dimension_semantics = [#tpu.dimension_semantics<parallel>, #tpu.dimension_semantics<parallel>], iteration_bounds = array<i64: 2, 2>, scalar_prefetch = 0 : i64, scratch_operands = 0 : i64, tpu.core_type = #tpu.core_type<tc>, window_params = [{transform_indices = @transform_0, window_bounds = array<i64: 1, 4, 128>}, {transform_indices = @transform_1, window_bounds = array<i64: 1, 1, 128>}, {transform_indices = @transform_2, window_bounds = array<i64: 1, 1, 1, 128>}]} {
    %c0 = arith.constant 0 : index
    %c0_0 = arith.constant 0 : index
    %c0_1 = arith.constant 0 : index
    %0 = vector.load %arg2[%c0, %c0_0, %c0_1] : memref<1x4x128xf32, #tpu.memory_space<vmem>>, vector<1x4x128xf32>
    %c0_2 = arith.constant 0 : index
    %c0_3 = arith.constant 0 : index
    %c0_4 = arith.constant 0 : index
    %1 = vector.load %arg3[%c0_2, %c0_3, %c0_4] : memref<1x1x128xi8, #tpu.memory_space<vmem>>, vector<1x1x128xi8>
    %2 = arith.extsi %1 : vector<1x1x128xi8> to vector<1x1x128xi32>
    %3 = tpu.iota {dimensions = array<i32: 1>} : vector<1x4x128xi32>
    %4 = vector.broadcast %2 : vector<1x1x128xi32> to vector<1x4x128xi32>
    %5 = arith.cmpi eq, %3, %4 : vector<1x4x128xi32>
    %cst = arith.constant dense<0xFF800000> : vector<1x128xf32>
    %6 = vector.multi_reduction <maximumf>, %0, %cst [1] : vector<1x4x128xf32> to vector<1x128xf32>
    %7 = vector.shape_cast %6 : vector<1x128xf32> to vector<1x1x128xf32>
    %8 = vector.broadcast %7 : vector<1x1x128xf32> to vector<1x4x128xf32>
    %9 = arith.subf %0, %8 : vector<1x4x128xf32>
    %10 = math.exp %9 : vector<1x4x128xf32>
    %cst_5 = arith.constant dense<0.000000e+00> : vector<1x128xf32>
    %11 = vector.multi_reduction <add>, %10, %cst_5 [1] : vector<1x4x128xf32> to vector<1x128xf32>
    %12 = vector.shape_cast %11 : vector<1x128xf32> to vector<1x1x128xf32>
    %cst_6 = arith.constant 0xFF800000 : f32
    %13 = vector.broadcast %cst_6 : f32 to vector<1x4x128xf32>
    %14 = arith.select %5, %0, %13 : vector<1x4x128xi1>, vector<1x4x128xf32>
    %cst_7 = arith.constant dense<0xFF800000> : vector<1x128xf32>
    %15 = vector.multi_reduction <maximumf>, %14, %cst_7 [1] : vector<1x4x128xf32> to vector<1x128xf32>
    %16 = vector.shape_cast %15 : vector<1x128xf32> to vector<1x1x128xf32>
    %17 = arith.subf %7, %16 : vector<1x1x128xf32>
    %18 = math.log %12 : vector<1x1x128xf32>
    %19 = arith.addf %17, %18 : vector<1x1x128xf32>
    %cst_8 = arith.constant 0.000000e+00 : f32
    %20 = vector.broadcast %cst_8 : f32 to vector<1x4x128xf32>
    %21 = arith.select %5, %10, %20 : vector<1x4x128xi1>, vector<1x4x128xf32>
    %cst_9 = arith.constant dense<0xFF800000> : vector<1x128xf32>
    %22 = vector.multi_reduction <maximumf>, %21, %cst_9 [1] : vector<1x4x128xf32> to vector<1x128xf32>
    %23 = vector.shape_cast %22 : vector<1x128xf32> to vector<1x1x128xf32>
    %24 = arith.divf %23, %12 : vector<1x1x128xf32>
    %cst_10 = arith.constant 1.000000e+00 : f32
    %25 = vector.broadcast %cst_10 : f32 to vector<1x1x128xf32>
    %26 = arith.subf %25, %24 : vector<1x1x128xf32>
    %cst_11 = arith.constant 0.000000e+00 : f32
    %27 = vector.broadcast %cst_11 : f32 to vector<1x1x128xf32>
    %28 = arith.maximumf %26, %27 : vector<1x1x128xf32>
    %29 = arith.mulf %28, %28 : vector<1x1x128xf32>
    %30 = arith.mulf %29, %19 : vector<1x1x128xf32>
    %31 = vector.shape_cast %30 : vector<1x1x128xf32> to vector<1x1x1x128xf32>
    %cst_12 = arith.constant dense<0.000000e+00> : vector<1xf32>
    %32 = vector.multi_reduction <add>, %31, %cst_12 [1, 2, 3] : vector<1x1x1x128xf32> to vector<1xf32>
    %33 = vector.shape_cast %32 : vector<1xf32> to vector<1x1x1x1xf32>
    %34 = vector.extract %33[0, 0, 0, 0] : f32 from vector<1x1x1x1xf32>
    %35 = vector.broadcast %34 : f32 to vector<1x1x1x128xf32>
    %c0_13 = arith.constant 0 : index
    %c0_14 = arith.constant 0 : index
    %c0_15 = arith.constant 0 : index
    %c0_16 = arith.constant 0 : index
    %36 = vector.load %arg4[%c0_13, %c0_14, %c0_15, %c0_16] : memref<1x1x1x128xf32, #tpu.memory_space<vmem>>, vector<1x1x1x128xf32>
    tpu.vector_store %arg4[%c0_13, %c0_14, %c0_15, %c0_16], %35 {strides = array<i32>} : memref<1x1x1x128xf32, #tpu.memory_space<vmem>>, vector<1x1x1x128xf32>,
    return
  }
  func.func @transform_0(%arg0: i32, %arg1: i32) -> (i32, i32, i32) {
    %c0_i32 = arith.constant 0 : i32
    %c0_i32_0 = arith.constant 0 : i32
    return %arg0, %c0_i32, %arg1 : i32, i32, i32
  }
  func.func @transform_1(%arg0: i32, %arg1: i32) -> (i32, i32, i32) {
    %c0_i32 = arith.constant 0 : i32
    %c0_i32_0 = arith.constant 0 : i32
    return %arg0, %c0_i32, %arg1 : i32, i32, i32
  }
  func.func @transform_2(%arg0: i32, %arg1: i32) -> (i32, i32, i32, i32) {
    %c0_i32 = arith.constant 0 : i32
    %c0_i32_0 = arith.constant 0 : i32
    %c0_i32_1 = arith.constant 0 : i32
    return %arg0, %arg1, %c0_i32, %c0_i32_0 : i32, i32, i32, i32
  }
}

</mosaic_0001>

<llo_original>
// kernel: tpu_custom_call.1
$region0: #{tpu_custom_call.1}
  #allocation0 [shape = 'u32[]', space=smem, size = 0x4, offset = 0x4, fixed_abs, tag = 'smem constant byte address 0x4 - core index']
  #allocation1 [shape = 'u32[144,128]{1,0:T(1,128)}', space=vmem, size = 0x12000, scoped, tag = 'internal scratch']
  %s0 = inlined_call_operand.hbm [shape: f32[2,4,256], index: 0, kind: input, shape index: {}]
  %s1 = inlined_call_operand.vmem [shape: s8[2,1,256], index: 1, kind: input, shape index: {}]
  %s2 = inlined_call_operand.hbm [shape: f32[2,2,1,128], index: 2, kind: output, shape index: {}]
  %s3 = sld [smem:[#allocation0]]
  $region45: #{tpu_custom_call.1} parent=0
    _
  %s5 = ssub.s32 1, %s3
  %s6 = scalar_select 0, %s5, %s3
  $region1: #{tpu_custom_call.1} parent=0
    #allocation2 [shape = 'u8[4096]{0}', space=vmem, size = 0x1000, scoped, tag = 'input window, operand 0']
    #allocation3 [shape = 's32[2]{0}', space=sflag, size = 0x8, scoped, tag = 'scoped memory for tpu_custom_call.1']
    #allocation4 [shape = 's32[2]{0}', space=sflag, size = 0x8, scoped, tag = 'scoped memory for tpu_custom_call.1']
    #allocation5 [shape = 'u8[1024]{0}', space=vmem, size = 0x400, scoped, tag = 'output window, operand 0']
    %7 = vsyncpa [#allocation3], 0
    %s8 = scalar_lea.sflag [#allocation3], 1
    %9 = vsyncpa %s8, 0
    %10 = vsyncpa [#allocation4], 0
    %s11 = scalar_lea.sflag [#allocation4], 1
    %12 = vsyncpa %s11, 0
    loop: start=0, step=1, limit=6
    $region2: #{tpu_custom_call.1} parent=1 // loop_pre_header
      _
    $region3: #{tpu_custom_call.1} parent=1 // loop_header
      %s14 = sphi 0, %s18
      %p15 = scmp.ge.s32.totalorder %s14, 6
      %s21 = sphi 0, %s33
      %s22 = sphi 0, %s29
      %s23 = sphi 0, %s21
      %s24 = sphi 0, %s22
      %s25 = sphi 0, %s23
      %s26 = sphi 0, %s24
      %s38 = sphi 0, %s40
      %s41 = sphi 0, %s38
      %s42 = sphi 0, %s41
      %s58 = sphi 0, %s42
      %s66 = sphi 0, %s68
      %s69 = sphi 0, %s66
      %s70 = sphi 0, %s69
      %s86 = sphi 0, %s70
      %s94 = sphi 0, %s96
      %s97 = sphi 0, %s94
      %s98 = sphi 0, %s97
      %s114 = sphi 0, %s98
    $region4: #{tpu_custom_call.1} parent=1 // loop_header_branch
      %17 = sbr.rel (%p15) target = $region8
    $region5: #{tpu_custom_call.1} parent=1 // loop_body
      %s19 = ssub.s32 %s14, 1
      %s20 = ssub.s32 %s14, 2
      %s27 = sadd.s32 1, %s22
      %p28 = scmp.ge.s32.totalorder %s27, 2
      %s29 = scalar_select %p28, 0, %s27
      %s30 = sadd.s32 1, %s21
      %s31 = scalar_select %p28, %s30, %s21
      %p32 = scmp.ge.s32.totalorder %s31, 2
      %s33 = scalar_select %p32, 0, %s31
      %s34 = ssub.s32 %s21, %s33
      %s35 = ssub.s32 %s22, %s29
      %s36 = sor.u32 %s34, %s35
      %p37 = scmp.eq.s32.totalorder %s36, 0
      %s39 = sadd.s32 %s38, 1
      %s40 = scalar_select %p37, %s38, %s39
      %p43 = pneg %p37
      %p44 = scmp.eq.s32.totalorder %s14, 3
      %p45 = por %p43, %p44
      %p46 = scmp.ne.s32.totalorder %s38, %s41
      %p47 = scmp.eq.s32.totalorder %s14, 0
      %p48 = por %p46, %p47
      %p49 = scmp.ne.s32.totalorder %s38, %s41
      %p50 = scmp.eq.s32.totalorder %s19, 3
      %p51 = por %p49, %p50
      %p52 = scmp.ne.s32.totalorder %s41, %s42
      %p53 = scmp.eq.s32.totalorder %s19, 0
      %p54 = por %p52, %p53
      %p55 = scmp.ne.s32.totalorder %s41, %s42
      %p56 = scmp.eq.s32.totalorder %s20, 3
      %p57 = por %p55, %p56
      %p59 = scmp.ne.s32.totalorder %s42, %s58
      %p60 = scmp.eq.s32.totalorder %s20, 0
      %p61 = por %p59, %p60
      %s62 = ssub.s32 %s21, %s33
      %s63 = ssub.s32 %s22, %s29
      %s64 = sor.u32 %s62, %s63
      %p65 = scmp.eq.s32.totalorder %s64, 0
      %s67 = sadd.s32 %s66, 1
      %s68 = scalar_select %p65, %s66, %s67
      %p71 = pneg %p65
      %p72 = scmp.eq.s32.totalorder %s14, 3
      %p73 = por %p71, %p72
      %p74 = scmp.ne.s32.totalorder %s66, %s69
      %p75 = scmp.eq.s32.totalorder %s14, 0
      %p76 = por %p74, %p75
      %p77 = scmp.ne.s32.totalorder %s66, %s69
      %p78 = scmp.eq.s32.totalorder %s19, 3
      %p79 = por %p77, %p78
      %p80 = scmp.ne.s32.totalorder %s69, %s70
      %p81 = scmp.eq.s32.totalorder %s19, 0
      %p82 = por %p80, %p81
      %p83 = scmp.ne.s32.totalorder %s69, %s70
      %p84 = scmp.eq.s32.totalorder %s20, 3
      %p85 = por %p83, %p84
      %p87 = scmp.ne.s32.totalorder %s70, %s86
      %p88 = scmp.eq.s32.totalorder %s20, 0
      %p89 = por %p87, %p88
      %s90 = ssub.s32 %s21, %s33
      %s91 = ssub.s32 %s22, %s29
      %s92 = sor.u32 %s90, %s91
      %p93 = scmp.eq.s32.totalorder %s92, 0
      %s95 = sadd.s32 %s94, 1
      %s96 = scalar_select %p93, %s94, %s95
      %p99 = pneg %p93
      %p100 = scmp.eq.s32.totalorder %s14, 3
      %p101 = por %p99, %p100
      %p102 = scmp.ne.s32.totalorder %s94, %s97
      %p103 = scmp.eq.s32.totalorder %s14, 0
      %p104 = por %p102, %p103
      %p105 = scmp.ne.s32.totalorder %s94, %s97
      %p106 = scmp.eq.s32.totalorder %s19, 3
      %p107 = por %p105, %p106
      %p108 = scmp.ne.s32.totalorder %s97, %s98
      %p109 = scmp.eq.s32.totalorder %s19, 0
      %p110 = por %p108, %p109
      %p111 = scmp.ne.s32.totalorder %s97, %s98
      %p112 = scmp.eq.s32.totalorder %s20, 3
      %p113 = por %p111, %p112
      %p115 = scmp.ne.s32.totalorder %s98, %s114
      %p116 = scmp.eq.s32.totalorder %s20, 0
      %p117 = por %p115, %p116
      %p118 = scmp.le.s32.totalorder 1, %s14
      %p119 = scmp.lt.s32.totalorder %s14, 5
      %p120 = pnand %p118, %p119
      %p121 = pneg %p120
      // Predicated region
      $region9: #{tpu_custom_call.1} parent=5 // pred_check
        _
      $region10: #{tpu_custom_call.1} parent=5 // pred_check_branch
        %123 = sbr.rel (%p120) target = $region12
      $region11: #{tpu_custom_call.1} parent=5 // pred_region
        %s124 = ssub.s32 %s14, 1
      $region12: #{tpu_custom_call.1} parent=5 // pred_fallthru
        _
      %p125 = scmp.lt.s32.totalorder %s14, 4
      // Predicated region
      $region13: #{tpu_custom_call.1} parent=5 // pred_check
        %p126 = pneg %p125
      $region14: #{tpu_custom_call.1} parent=5 // pred_check_branch
        %128 = sbr.rel (%p126) target = $region16
      $region15: #{tpu_custom_call.1} parent=5 // pred_region
        // Predicated region
        $region17: #{tpu_custom_call.1} parent=15 // pred_check
          %p129 = pneg %p48
        $region18: #{tpu_custom_call.1} parent=15 // pred_check_branch
          %131 = sbr.rel (%p129) target = $region20
        $region19: #{tpu_custom_call.1} parent=15 // pred_region
          %s132 = sand.u32 %s38, 1
          %s133 = scalar_lea.sflag [#allocation3], %s132
          %s134 = sand.u32 %s38, 1
          %s135 = smul.addr %s134, 4
          %s136 = scalar_lea.vmem [#allocation2], %s135
          %s138 = ssub.s32 64, 64
          %139 = vsyncadd %s133, %s138
          %s140 = smul.addr %s21, 2
          %s141 = sadd.s32 %s22, %s140
          %s142 = smul.addr %s141, 64
          %s143 = scalar_lea.hbm %s0, %s142
          %s145 = sshll.u32 %s136, 4
          %s146 = int_to_ptr.vmem [resolvable:$true] %s145
          %148 = dma.hbm_to_vmem [thread:$0]  %s143, 64, %s146, %s133
        $region20: #{tpu_custom_call.1} parent=15 // pred_fallthru
          _
        // Predicated region
        $region21: #{tpu_custom_call.1} parent=15 // pred_check
          %p149 = pneg %p76
        $region22: #{tpu_custom_call.1} parent=15 // pred_check_branch
          %151 = sbr.rel (%p149) target = $region24
        $region23: #{tpu_custom_call.1} parent=15 // pred_region
          %p152 = scmp.lt.s32.totalorder %s21, 1
          %s153 = scalar_select %p152, %s21, 1
          %p154 = scmp.lt.s32.totalorder %s22, 1
          %s155 = scalar_select %p154, %s22, 1
          %s156 = smul.addr %s153, 2
          %s157 = sadd.s32 %s155, %s156
          %s158 = scalar_lea.vmem %s1, %s157
        $region24: #{tpu_custom_call.1} parent=15 // pred_fallthru
          _
      $region16: #{tpu_custom_call.1} parent=5 // pred_fallthru
        _
      %p159 = scmp.le.s32.totalorder 1, %s14
      %p160 = scmp.lt.s32.totalorder %s14, 5
      %p161 = pnand %p159, %p160
      %p162 = pneg %p161
      // Predicated region
      $region25: #{tpu_custom_call.1} parent=5 // pred_check
        _
      $region26: #{tpu_custom_call.1} parent=5 // pred_check_branch
        %164 = sbr.rel (%p161) target = $region28
      $region27: #{tpu_custom_call.1} parent=5 // pred_region
        %s165 = ssub.s32 %s14, 1
        %s166 = sand.u32 %s41, 1
        %s167 = scalar_lea.sflag [#allocation3], %s166
        %s168 = sand.u32 %s41, 1
        %s169 = smul.addr %s168, 4
        %s170 = scalar_lea.vmem [#allocation2], %s169
        // Predicated region
        $region29: #{tpu_custom_call.1} parent=27 // pred_check
          %p171 = pneg %p54
        $region30: #{tpu_custom_call.1} parent=27 // pred_check_branch
          %173 = sbr.rel (%p171) target = $region32
        $region31: #{tpu_custom_call.1} parent=27 // pred_region
          %174 = dma.done %s167, 64
        $region32: #{tpu_custom_call.1} parent=27 // pred_fallthru
          _
        %s175 = sand.u32 %s41, 1
        %s176 = scalar_lea.sflag [#allocation3], %s175
        %s177 = sand.u32 %s41, 1
        %s178 = smul.addr %s177, 4
        %s179 = scalar_lea.vmem [#allocation2], %s178
        %p180 = pneg %p54
        %p181 = pneg %p51
        %p182 = scmp.lt.s32.totalorder %s23, 1
        %s183 = scalar_select %p182, %s23, 1
        %p184 = scmp.lt.s32.totalorder %s24, 1
        %s185 = scalar_select %p184, %s24, 1
        %s186 = smul.addr %s183, 2
        %s187 = sadd.s32 %s185, %s186
        %s188 = scalar_lea.vmem %s1, %s187
        %p189 = pneg %p82
        %p190 = pneg %p79
        %p191 = pneg %p110
        %p192 = pneg %p107
        %s193 = sand.u32 %s97, 1
        %s194 = scalar_lea.sflag [#allocation4], %s193
        %s195 = sand.u32 %s97, 1
        %s196 = scalar_lea.vmem [#allocation5], %s195
        %p197 = scmp.lt.s32.totalorder %s23, 1
        %s198 = scalar_select %p197, %s23, 1
        %p199 = scmp.lt.s32.totalorder %s24, 1
        %s200 = scalar_select %p199, %s24, 1
        %s201 = smul.addr %s198, 2
        %s202 = sadd.s32 %s200, %s201
        %s203 = scalar_lea.vmem %s1, %s202
        %v204 = vld [vmem:[%s170] sm:$0xf]
        %v205 = vld [vmem:[%s203] sm:$0x1]
        %v206 = vunpack.c.0.s8 %v205
        %v207 = vlaneseq
        %v208 = vshrl.u32 %v207, 7
        %v209 = vlaneseq
        %v210 = vshrl.u32 %v209, 7
        %v211 = vsub.s32 0, %v210
        %v212 = vrot.slane %v206, %v211
        %vm213 = vcmp.eq.s32.totalorder %v208, %v212
        %vm214 = vcmask 1043456
        %v215 = vsel %vm214, %v204, -inf
        %v216 = vrot.slane %v215, 4
        %v217 = vmax.f32 %v215, %v216
        %v218 = vrot.slane %v217, 2
        %v219 = vmax.f32 %v217, %v218
        %v220 = vrot.slane %v219, 1
        %v221 = vmax.f32 %v219, %v220
        %v222 = vsub.f32 %v204, %v221
        %v223 = vmul.f32 %v222, 1.442695
        %v224 = vpow.pop %v223
        %v225 = vsel %vm214, %v224, 0.0
        %v226 = vrot.slane %v225, 4
        %v227 = vadd.f32 %v225, %v226
        %v228 = vrot.slane %v227, 2
        %v229 = vadd.f32 %v227, %v228
        %v230 = vrot.slane %v229, 1
        %v231 = vadd.f32 %v229, %v230
        %v232 = vsel %vm213, %v204, -inf
        %v233 = vsel %vm214, %v232, -inf
        %v234 = vrot.slane %v233, 4
        %v235 = vmax.f32 %v233, %v234
        %v236 = vrot.slane %v235, 2
        %v237 = vmax.f32 %v235, %v236
        %v238 = vrot.slane %v237, 1
        %v239 = vmax.f32 %v237, %v238
        %v240 = vsub.f32 %v221, %v239
        %v241 = vlog2.pop %v231
        %v242 = vmul.f32 %v241, 0.6931472
        %v243 = vadd.f32 %v240, %v242
        %v244 = vsel %vm213, %v224, 0.0
        %v245 = vsel %vm214, %v244, -inf
        %v246 = vrot.slane %v245, 4
        %v247 = vmax.f32 %v245, %v246
        %v248 = vrot.slane %v247, 2
        %v249 = vmax.f32 %v247, %v248
        %v250 = vrot.slane %v249, 1
        %v251 = vmax.f32 %v249, %v250
        %v252 = vrcp.pop %v231
        %v253 = vmul.f32 %v251, %v252
        %v254 = vsub.f32 1.0, %v253
        %v255 = vmax.f32 %v254, 0.0
        %v256 = vmul.f32 %v255, %v255
        %v257 = vmul.f32 %v256, %v243
        %vm258 = vcmask 1040384
        %v259 = vsel %vm258, %v257, 0.0
        %260 = vadd.xlane.f32.xlu0 %v259
        %v261 = vpop.xlane.xlu0 %260
        %v262 = vrot.slane %v261, 4
        %v263 = vadd.f32 %v261, %v262
        %v264 = vrot.slane %v263, 2
        %v265 = vadd.f32 %v263, %v264
        %v266 = vrot.slane %v265, 1
        %v267 = vadd.f32 %v265, %v266
        %s268 = vtos %v267
        %v269 = vstv %s268
        %270 = vst [vmem:[%s196] sm:$0x1] %v269
        %s271 = sand.u32 %s97, 1
        %s272 = scalar_lea.sflag [#allocation4], %s271
        %s273 = sand.u32 %s97, 1
        %s274 = scalar_lea.vmem [#allocation5], %s273
        // Predicated region
        $region33: #{tpu_custom_call.1} parent=27 // pred_check
          %p275 = pneg %p107
        $region34: #{tpu_custom_call.1} parent=27 // pred_check_branch
          %277 = sbr.rel (%p275) target = $region36
        $region35: #{tpu_custom_call.1} parent=27 // pred_region
          %s279 = ssub.s32 16, 16
          %280 = vsyncadd %s272, %s279
          %s281 = smul.addr %s23, 2
          %s282 = sadd.s32 %s24, %s281
          %s283 = smul.addr %s282, 16
          %s284 = scalar_lea.hbm %s2, %s283
          %s286 = sshll.u32 %s274, 4
          %s287 = int_to_ptr.vmem [resolvable:$true] %s286
          %289 = dma.vmem_to_hbm [thread:$0]  %s287, 16, %s284, %s272
        $region36: #{tpu_custom_call.1} parent=27 // pred_fallthru
          _
      $region28: #{tpu_custom_call.1} parent=5 // pred_fallthru
        _
      %p290 = scmp.le.s32.totalorder 2, %s14
      // Predicated region
      $region37: #{tpu_custom_call.1} parent=5 // pred_check
        %p291 = pneg %p290
      $region38: #{tpu_custom_call.1} parent=5 // pred_check_branch
        %293 = sbr.rel (%p291) target = $region40
      $region39: #{tpu_custom_call.1} parent=5 // pred_region
        %s294 = ssub.s32 %s14, 2
        // Predicated region
        $region41: #{tpu_custom_call.1} parent=39 // pred_check
          %p295 = pneg %p113
        $region42: #{tpu_custom_call.1} parent=39 // pred_check_branch
          %297 = sbr.rel (%p295) target = $region44
        $region43: #{tpu_custom_call.1} parent=39 // pred_region
          %s298 = sand.u32 %s98, 1
          %s299 = scalar_lea.sflag [#allocation4], %s298
          %s300 = sand.u32 %s98, 1
          %s301 = scalar_lea.vmem [#allocation5], %s300
          %302 = dma.done %s299, 16
        $region44: #{tpu_custom_call.1} parent=39 // pred_fallthru
          _
      $region40: #{tpu_custom_call.1} parent=5 // pred_fallthru
        _
    $region6: #{tpu_custom_call.1} parent=1 // loop_footer
      %s18 = sadd.s32 1, %s14
    $region7: #{tpu_custom_call.1} parent=1 // loop_footer_branch
      %13 = sbr.rel target = $region3
    $region8: #{tpu_custom_call.1} parent=1 // loop_exit
      _
    %303 = vsyncpa [#allocation3], 1
    %s304 = scalar_lea.sflag [#allocation3], 1
    %305 = vsyncpa %s304, 1
    %306 = vsyncpa [#allocation4], 1
    %s307 = scalar_lea.sflag [#allocation4], 1
    %308 = vsyncpa %s307, 1

</llo_original>
